<compile_context>
chip_gen: v7x
topology: tpu7x:2x2x1
jax: 0.10.0
libtpu: 0.0.40
codegen_flags: <defaults>
</compile_context>

<pallas_src>
import math

import jax
import jax.numpy as jnp
from jax.experimental import pallas as pl
from jax.experimental.pallas import tpu as pltpu


def _lif_cw_kernel(p_ref, x_ref, h_ref, g_ref, out_ref, u_ref):
    p = p_ref[...]                 # (R, 8) fused per-row (= per-channel) coefficients
    A   = p[:, 0:1]                # 1 - al*(1 - tau)
    B   = p[:, 1:2]                # 1 - be*(1 - conduct)
    D   = p[:, 2:3]                # -(1 - al)*leak
    E   = p[:, 3:4]                # -(1 - ga)*reVth
    ga  = p[:, 4:5]                # gamma gate
    vth = p[:, 5:6]                # sigmoid(Vth)

    x = x_ref[...]
    h = h_ref[...]
    g = g_ref[...]

    # Same left-to-right association as the PyTorch expression (bitwise match).
    u = A * h * (1.0 - ga * g) + D + B * x + E * g
    u_ref[...] = u
    out_ref[...] = ((u - vth) > 0.0).astype(out_ref.dtype)   # SpikeAct_extended fwd


def _gate_values(params, *, soft_mode, static_gate):
    """Forward values of the (alpha, beta, gamma) gates, each of shape (C,)."""
    sig = jax.nn.sigmoid
    a, b, g = (jnp.asarray(params[k], jnp.float32) for k in ("alpha", "beta", "gamma"))
    if static_gate:
        if soft_mode:
            return sig(a), sig(b), sig(g)          # detach/clone are autograd-only
        return ((a > 0.0).astype(jnp.float32),
                (b > 0.0).astype(jnp.float32),
                (g > 0.0).astype(jnp.float32))
    if soft_mode:
        return sig(a), sig(b), sig(g)
    return ((sig(a) > 0.5).astype(jnp.float32),    # ArchAct forward
            (sig(b) > 0.5).astype(jnp.float32),
            (sig(g) > 0.5).astype(jnp.float32))


def lif_spike_cw_forward(x_t, h_t, g_t, params, *, soft_mode=True,
                         static_gate=True, spike_dtype=jnp.bfloat16):
    """params: dict of raw (pre-sigmoid) parameters, shape (C,) except conduct (T, C)."""
    N, C, H, W = x_t.shape
    rows, cols = N * C, H * W

    # ---- fused per-channel coefficients (tiny C-length XLA compute) --------
    sig = jax.nn.sigmoid
    f32 = lambda k: jnp.asarray(params[k], jnp.float32)
    tau, vth, leak = sig(f32("tau")), sig(f32("Vth")), sig(f32("leak"))
    cond = sig(jnp.asarray(params["conduct"], jnp.float32)[0])   # conduct[0]
    revth = sig(f32("reVth"))
    al, be, ga = _gate_values(params, soft_mode=soft_mode, static_gate=static_gate)

    A = 1.0 - al * (1.0 - tau)
    B = 1.0 - be * (1.0 - cond)
    D = -(1.0 - al) * leak
    E = -(1.0 - ga) * revth
    zeros = jnp.zeros_like(A)
    coeff_c = jnp.stack([A, B, D, E, ga, vth, zeros, zeros], axis=1)   # (C, 8)
    coeff = jnp.tile(coeff_c, (N, 1))                                   # (N*C, 8)

    # ---- native-layout 2-D views (free reshapes, no transpose) -------------
    x2 = x_t.reshape(rows, cols).astype(jnp.float32)
    h2 = h_t.reshape(rows, cols).astype(jnp.float32)
    g2 = g_t.reshape(rows, cols).astype(jnp.float32)

    # ---- block sizing: lane-dense, ~2 MiB per f32 input block --------------
    TARGET = 2 * 1024 * 1024          # per-array block bytes; 5 arrays x 2 bufs ~ 20 MiB VMEM
    if cols % 128 == 0:
        lane_block = min(cols, (TARGET // (4 * 8)) // 128 * 128)
    else:
        lane_block = cols             # full-dim fallback for unaligned small spatial sizes
    if rows < 8:
        row_block = rows              # full-dim fallback for tiny N*C
    else:
        row_cap = max(8, (TARGET // (4 * lane_block)) // 8 * 8)
        row_block = min(rows // 8 * 8, row_cap)
        if row_block >= 16:
            row_block -= row_block % 16   # dense sublane packing (also bf16-friendly)

    grid = (pl.cdiv(rows, row_block), pl.cdiv(cols, lane_block))

    data_spec = pl.BlockSpec((row_block, lane_block), lambda i, j: (i, j))
    coeff_spec = pl.BlockSpec((row_block, 8), lambda i, j: (i, 0))

    out2, u2 = pl.pallas_call(
        _lif_cw_kernel,
        out_shape=(jax.ShapeDtypeStruct((rows, cols), spike_dtype),
                   jax.ShapeDtypeStruct((rows, cols), jnp.float32)),
        grid_spec=pltpu.PrefetchScalarGridSpec(
            num_scalar_prefetch=0,
            grid=grid,
            in_specs=[coeff_spec, data_spec, data_spec, data_spec],
            out_specs=(data_spec, data_spec),
        ),
        compiler_params=pltpu.CompilerParams(
            dimension_semantics=("parallel", "parallel"),
            vmem_limit_bytes=48 * 1024 * 1024),
    )(coeff, x2, h2, g2)

    # forward returns (out, new_h)
    return out2.reshape(N, C, H, W), u2.reshape(N, C, H, W)


def make_params(plane, T, gate=(0.6, 0.8, 0.5), param=(0.25, 0.5, 0.2, 0.4)):
    """Deterministic init matching LIFSpike_CW.__init__ (raw, pre-sigmoid values)."""
    inv_sig = lambda p: -math.log(1.0 / p - 1.0)
    alpha, beta, gamma = [inv_sig((g - 0.5) * 0.5 + 0.5) * jnp.ones((plane,), jnp.float32)
                          for g in gate]
    tau, Vth, leak = [inv_sig(p) * jnp.ones((plane,), jnp.float32) for p in param[:-1]]
    reVth = inv_sig(param[1]) * jnp.ones((plane,), jnp.float32)
    conduct = inv_sig(param[3]) * jnp.ones((T, plane), jnp.float32)
    return dict(alpha=alpha, beta=beta, gamma=gamma,
                tau=tau, Vth=Vth, leak=leak, reVth=reVth, conduct=conduct)


def _reference_forward(x, h, g, P, *, soft_mode=True, static_gate=True):
    """Pure-JAX reference mirroring the PyTorch math (for a correctness check)."""
    sig = jax.nn.sigmoid
    bc = lambda p: jnp.asarray(p, jnp.float32).reshape(1, -1, 1, 1)
    tau, Vth, leak = sig(bc(P["tau"])), sig(bc(P["Vth"])), sig(bc(P["leak"]))
    reVth, cond = sig(bc(P["reVth"])), sig(bc(P["conduct"][0]))
    if static_gate:
        if soft_mode:
            al, be, ga = sig(bc(P["alpha"])), sig(bc(P["beta"])), sig(bc(P["gamma"]))
        else:
            al, be, ga = [(bc(p) > 0.0).astype(jnp.float32)
                          for p in (P["alpha"], P["beta"], P["gamma"])]
    elif soft_mode:
        al, be, ga = sig(bc(P["alpha"])), sig(bc(P["beta"])), sig(bc(P["gamma"]))
    else:
        al, be, ga = [(sig(bc(p)) > 0.5).astype(jnp.float32)
                      for p in (P["alpha"], P["beta"], P["gamma"])]
    I = x * (1 - be * (1 - cond))
    u = (1 - al * (1 - tau)) * h * (1 - ga * g) - (1 - al) * leak + I - (1 - ga) * reVth * g
    o = (u - Vth > 0.0).astype(jnp.float32)
    return o, u


if __name__ == "__main__":
    N, C, H, W, T = 2, 4, 16, 16, 8

    key = jax.random.PRNGKey(0)
    kx, kh, kg = jax.random.split(key, 3)
    x_t = jax.random.normal(kx, (N, C, H, W), jnp.float32)          # W * o_{t-1}^{n-1}
    h_t = jax.random.normal(kh, (N, C, H, W), jnp.float32)          # membrane potential
    g_t = (jax.random.uniform(kg, (N, C, H, W)) > 0.5).astype(jnp.float32)  # previous spikes

    params = make_params(C, T)

    out, h_new = lif_spike_cw_forward(x_t, h_t, g_t, params,
                                      soft_mode=True, static_gate=True)
    jax.block_until_ready((out, h_new))

    out_ref, h_ref = _reference_forward(x_t, h_t, g_t, params,
                                        soft_mode=True, static_gate=True)
    assert jnp.allclose(h_new, h_ref, atol=1e-5, rtol=1e-5)
    # spike values are exactly {0, 1}; compare after casting the bf16 output back to f32
    assert jnp.array_equal(out.astype(jnp.float32), out_ref)

    print("KERNEL_OK")
</pallas_src>

<mosaic_0001>
module attributes {stable_mosaic.version = 11 : i64} {
  func.func @_lif_cw_kernel(%arg0: i32, %arg1: i32, %arg2: memref<8x8xf32, #tpu.memory_space<vmem>>, %arg3: memref<8x256xf32, #tpu.memory_space<vmem>>, %arg4: memref<8x256xf32, #tpu.memory_space<vmem>>, %arg5: memref<8x256xf32, #tpu.memory_space<vmem>>, %arg6: memref<8x256xbf16, #tpu.memory_space<vmem>>, %arg7: memref<8x256xf32, #tpu.memory_space<vmem>>) attributes {dimension_semantics = [#tpu.dimension_semantics<parallel>, #tpu.dimension_semantics<parallel>], iteration_bounds = array<i64: 1, 1>, scalar_prefetch = 0 : i64, scratch_operands = 0 : i64, tpu.core_type = #tpu.core_type<tc>, window_params = [{transform_indices = @transform_0, window_bounds = array<i64: 8, 8>}, {transform_indices = @transform_1, window_bounds = array<i64: 8, 256>}, {transform_indices = @transform_2, window_bounds = array<i64: 8, 256>}, {transform_indices = @transform_3, window_bounds = array<i64: 8, 256>}, {transform_indices = @transform_4, window_bounds = array<i64: 8, 256>}, {transform_indices = @transform_5, window_bounds = array<i64: 8, 256>}]} {
    %c0 = arith.constant 0 : index
    %c0_0 = arith.constant 0 : index
    %0 = vector.load %arg2[%c0, %c0_0] : memref<8x8xf32, #tpu.memory_space<vmem>>, vector<8x8xf32>
    %1 = vector.extract_strided_slice %0 {offsets = [0, 0], sizes = [8, 1], strides = [1, 1]} : vector<8x8xf32> to vector<8x1xf32>
    %2 = vector.extract_strided_slice %0 {offsets = [0, 1], sizes = [8, 1], strides = [1, 1]} : vector<8x8xf32> to vector<8x1xf32>
    %3 = vector.extract_strided_slice %0 {offsets = [0, 2], sizes = [8, 1], strides = [1, 1]} : vector<8x8xf32> to vector<8x1xf32>
    %4 = vector.extract_strided_slice %0 {offsets = [0, 3], sizes = [8, 1], strides = [1, 1]} : vector<8x8xf32> to vector<8x1xf32>
    %5 = vector.extract_strided_slice %0 {offsets = [0, 4], sizes = [8, 1], strides = [1, 1]} : vector<8x8xf32> to vector<8x1xf32>
    %6 = vector.extract_strided_slice %0 {offsets = [0, 5], sizes = [8, 1], strides = [1, 1]} : vector<8x8xf32> to vector<8x1xf32>
    %c0_1 = arith.constant 0 : index
    %c0_2 = arith.constant 0 : index
    %7 = vector.load %arg3[%c0_1, %c0_2] : memref<8x256xf32, #tpu.memory_space<vmem>>, vector<8x256xf32>
    %c0_3 = arith.constant 0 : index
    %c0_4 = arith.constant 0 : index
    %8 = vector.load %arg4[%c0_3, %c0_4] : memref<8x256xf32, #tpu.memory_space<vmem>>, vector<8x256xf32>
    %c0_5 = arith.constant 0 : index
    %c0_6 = arith.constant 0 : index
    %9 = vector.load %arg5[%c0_5, %c0_6] : memref<8x256xf32, #tpu.memory_space<vmem>>, vector<8x256xf32>
    %10 = vector.broadcast %1 : vector<8x1xf32> to vector<8x256xf32>
    %11 = arith.mulf %10, %8 : vector<8x256xf32>
    %12 = vector.broadcast %5 : vector<8x1xf32> to vector<8x256xf32>
    %13 = arith.mulf %12, %9 : vector<8x256xf32>
    %cst = arith.constant 1.000000e+00 : f32
    %14 = vector.broadcast %cst : f32 to vector<8x256xf32>
    %15 = arith.subf %14, %13 : vector<8x256xf32>
    %16 = arith.mulf %11, %15 : vector<8x256xf32>
    %17 = vector.broadcast %3 : vector<8x1xf32> to vector<8x256xf32>
    %18 = arith.addf %16, %17 : vector<8x256xf32>
    %19 = vector.broadcast %2 : vector<8x1xf32> to vector<8x256xf32>
    %20 = arith.mulf %19, %7 : vector<8x256xf32>
    %21 = arith.addf %18, %20 : vector<8x256xf32>
    %22 = vector.broadcast %4 : vector<8x1xf32> to vector<8x256xf32>
    %23 = arith.mulf %22, %9 : vector<8x256xf32>
    %24 = arith.addf %21, %23 : vector<8x256xf32>
    %c0_7 = arith.constant 0 : index
    %c0_8 = arith.constant 0 : index
    %25 = vector.load %arg7[%c0_7, %c0_8] : memref<8x256xf32, #tpu.memory_space<vmem>>, vector<8x256xf32>
    tpu.vector_store %arg7[%c0_7, %c0_8], %24 {strides = array<i32>} : memref<8x256xf32, #tpu.memory_space<vmem>>, vector<8x256xf32>,
    %26 = vector.broadcast %6 : vector<8x1xf32> to vector<8x256xf32>
    %27 = arith.subf %24, %26 : vector<8x256xf32>
    %cst_9 = arith.constant 0.000000e+00 : f32
    %28 = vector.broadcast %cst_9 : f32 to vector<8x256xf32>
    %29 = arith.cmpf ogt, %27, %28 : vector<8x256xf32>
    %30 = arith.extui %29 : vector<8x256xi1> to vector<8x256xi32>
    %31 = arith.sitofp %30 : vector<8x256xi32> to vector<8x256xf32>
    %32 = arith.truncf %31 : vector<8x256xf32> to vector<8x256xbf16>
    %c0_10 = arith.constant 0 : index
    %c0_11 = arith.constant 0 : index
    %33 = vector.load %arg6[%c0_10, %c0_11] : memref<8x256xbf16, #tpu.memory_space<vmem>>, vector<8x256xbf16>
    tpu.vector_store %arg6[%c0_10, %c0_11], %32 {strides = array<i32>} : memref<8x256xbf16, #tpu.memory_space<vmem>>, vector<8x256xbf16>,
    return
  }
  func.func @transform_0(%arg0: i32, %arg1: i32) -> (i32, i32) {
    %c0_i32 = arith.constant 0 : i32
    %c0_i32_0 = arith.constant 0 : i32
    return %arg0, %c0_i32 : i32, i32
  }
  func.func @transform_1(%arg0: i32, %arg1: i32) -> (i32, i32) {
    %c0_i32 = arith.constant 0 : i32
    return %arg0, %arg1 : i32, i32
  }
  func.func @transform_2(%arg0: i32, %arg1: i32) -> (i32, i32) {
    %c0_i32 = arith.constant 0 : i32
    return %arg0, %arg1 : i32, i32
  }
  func.func @transform_3(%arg0: i32, %arg1: i32) -> (i32, i32) {
    %c0_i32 = arith.constant 0 : i32
    return %arg0, %arg1 : i32, i32
  }
  func.func @transform_4(%arg0: i32, %arg1: i32) -> (i32, i32) {
    %c0_i32 = arith.constant 0 : i32
    return %arg0, %arg1 : i32, i32
  }
  func.func @transform_5(%arg0: i32, %arg1: i32) -> (i32, i32) {
    %c0_i32 = arith.constant 0 : i32
    return %arg0, %arg1 : i32, i32
  }
}

</mosaic_0001>

<llo_original>
// kernel: tpu_custom_call.1
$region0: #{tpu_custom_call.1}
  #allocation0 [shape = 'u32[]', space=smem, size = 0x4, offset = 0x4, fixed_abs, tag = 'smem constant byte address 0x4 - core index']
  #allocation1 [shape = 'u32[144,128]{1,0:T(1,128)}', space=vmem, size = 0x12000, scoped, tag = 'internal scratch']
  %s0 = inlined_call_operand.hbm [shape: f32[8,8], index: 0, kind: input, shape index: {}]
  %s1 = inlined_call_operand.hbm [shape: f32[8,256], index: 1, kind: input, shape index: {}]
  %s2 = inlined_call_operand.hbm [shape: f32[8,256], index: 2, kind: input, shape index: {}]
  %s3 = inlined_call_operand.hbm [shape: f32[8,256], index: 3, kind: input, shape index: {}]
  %s4 = inlined_call_operand.hbm [shape: bf16[8,256], index: 4, kind: output, shape index: {0}]
  %s5 = inlined_call_operand.hbm [shape: f32[8,256], index: 5, kind: output, shape index: {1}]
  %6 = xla_tuple %s4, %s5
  %s7 = sld [smem:[#allocation0]]
  $region50: #{tpu_custom_call.1} parent=0
    _
  %s9 = ssub.s32 1, %s7
  %s10 = scalar_select 0, %s9, %s7
  $region1: #{tpu_custom_call.1} parent=0
    #allocation2 [shape = 'u8[4096]{0}', space=vmem, size = 0x1000, scoped, tag = 'input window, operand 0, single buffered']
    #allocation3 [shape = 's32[1]{0}', space=sflag, size = 0x4, scoped, tag = 'scoped memory for tpu_custom_call.1']
    #allocation4 [shape = 's32[1]{0}', space=sflag, size = 0x4, scoped, tag = 'scoped memory for tpu_custom_call.1']
    #allocation5 [shape = 'u8[8192]{0}', space=vmem, size = 0x2000, scoped, tag = 'input window, operand 1, single buffered']
    #allocation6 [shape = 's32[1]{0}', space=sflag, size = 0x4, scoped, tag = 'scoped memory for tpu_custom_call.1']
    #allocation7 [shape = 'u8[8192]{0}', space=vmem, size = 0x2000, scoped, tag = 'input window, operand 2, single buffered']
    #allocation8 [shape = 'u8[8192]{0}', space=vmem, size = 0x2000, scoped, tag = 'input window, operand 3, single buffered']
    #allocation9 [shape = 's32[1]{0}', space=sflag, size = 0x4, scoped, tag = 'scoped memory for tpu_custom_call.1']
    #allocation10 [shape = 'u8[4096]{0}', space=vmem, size = 0x1000, scoped, tag = 'output window, operand 0, single buffered']
    #allocation11 [shape = 'u8[8192]{0}', space=vmem, size = 0x2000, scoped, tag = 'output window, operand 1, single buffered']
    #allocation12 [shape = 's32[1]{0}', space=sflag, size = 0x4, scoped, tag = 'scoped memory for tpu_custom_call.1']
    %11 = vsyncpa [#allocation3], 0
    %12 = vsyncpa [#allocation6], 0
    %13 = vsyncpa [#allocation9], 0
    %14 = vsyncpa [#allocation4], 0
    %15 = vsyncpa [#allocation12], 0
    // Predicated region
    $region2: #{tpu_custom_call.1} parent=1 // pred_check
      _
    $region3: #{tpu_custom_call.1} parent=1 // pred_check_branch
      %17 = sbr.rel (0) target = $region5
    $region4: #{tpu_custom_call.1} parent=1 // pred_region
      %s19 = ssub.s32 128, 128
      %20 = vsyncadd [#allocation3], %s19
      %s22 = sshll.u32 [#allocation2], 4
      %s23 = int_to_ptr.vmem [resolvable:$true] %s22
      %25 = dma.hbm_to_vmem [thread:$0]  %s0, 128, %s23, [#allocation3]
    $region5: #{tpu_custom_call.1} parent=1 // pred_fallthru
      _
    // Predicated region
    $region6: #{tpu_custom_call.1} parent=1 // pred_check
      _
    $region7: #{tpu_custom_call.1} parent=1 // pred_check_branch
      %27 = sbr.rel (0) target = $region9
    $region8: #{tpu_custom_call.1} parent=1 // pred_region
      %s29 = ssub.s32 256, 256
      %30 = vsyncadd [#allocation6], %s29
      %s32 = sshll.u32 [#allocation5], 4
      %s33 = int_to_ptr.vmem [resolvable:$true] %s32
      %35 = dma.hbm_to_vmem [thread:$0]  %s1, 256, %s33, [#allocation6]
    $region9: #{tpu_custom_call.1} parent=1 // pred_fallthru
      _
    // Predicated region
    $region10: #{tpu_custom_call.1} parent=1 // pred_check
      _
    $region11: #{tpu_custom_call.1} parent=1 // pred_check_branch
      %37 = sbr.rel (0) target = $region13
    $region12: #{tpu_custom_call.1} parent=1 // pred_region
      %s39 = ssub.s32 256, 256
      %40 = vsyncadd [#allocation6], %s39
      %s42 = sshll.u32 [#allocation7], 4
      %s43 = int_to_ptr.vmem [resolvable:$true] %s42
      %45 = dma.hbm_to_vmem [thread:$0]  %s2, 256, %s43, [#allocation6]
    $region13: #{tpu_custom_call.1} parent=1 // pred_fallthru
      _
    // Predicated region
    $region14: #{tpu_custom_call.1} parent=1 // pred_check
      _
    $region15: #{tpu_custom_call.1} parent=1 // pred_check_branch
      %47 = sbr.rel (0) target = $region17
    $region16: #{tpu_custom_call.1} parent=1 // pred_region
      %s49 = ssub.s32 256, 256
      %50 = vsyncadd [#allocation9], %s49
      %s52 = sshll.u32 [#allocation8], 4
      %s53 = int_to_ptr.vmem [resolvable:$true] %s52
      %55 = dma.hbm_to_vmem [thread:$0]  %s3, 256, %s53, [#allocation9]
    $region17: #{tpu_custom_call.1} parent=1 // pred_fallthru
      _
    // Predicated region
    $region18: #{tpu_custom_call.1} parent=1 // pred_check
      _
    $region19: #{tpu_custom_call.1} parent=1 // pred_check_branch
      %57 = sbr.rel (0) target = $region21
    $region20: #{tpu_custom_call.1} parent=1 // pred_region
      %58 = dma.done [#allocation3], 128
    $region21: #{tpu_custom_call.1} parent=1 // pred_fallthru
      _
    // Predicated region
    $region22: #{tpu_custom_call.1} parent=1 // pred_check
      _
    $region23: #{tpu_custom_call.1} parent=1 // pred_check_branch
      %60 = sbr.rel (0) target = $region25
    $region24: #{tpu_custom_call.1} parent=1 // pred_region
      %61 = dma.done [#allocation6], 256
    $region25: #{tpu_custom_call.1} parent=1 // pred_fallthru
      _
    // Predicated region
    $region26: #{tpu_custom_call.1} parent=1 // pred_check
      _
    $region27: #{tpu_custom_call.1} parent=1 // pred_check_branch
      %63 = sbr.rel (0) target = $region29
    $region28: #{tpu_custom_call.1} parent=1 // pred_region
      %64 = dma.done [#allocation6], 256
    $region29: #{tpu_custom_call.1} parent=1 // pred_fallthru
      _
    // Predicated region
    $region30: #{tpu_custom_call.1} parent=1 // pred_check
      _
    $region31: #{tpu_custom_call.1} parent=1 // pred_check_branch
      %66 = sbr.rel (0) target = $region33
    $region32: #{tpu_custom_call.1} parent=1 // pred_region
      %67 = dma.done [#allocation9], 256
    $region33: #{tpu_custom_call.1} parent=1 // pred_fallthru
      _
    %v68 = vld [vmem:[#allocation2] sm:$0xff]
    %v69 = vld [vmem:[#allocation5] sm:$0xff]
    %v70 = vld [vmem:[#allocation5 + $0x8] sm:$0xff]
    %v71 = vld [vmem:[#allocation7] sm:$0xff]
    %v72 = vld [vmem:[#allocation7 + $0x8] sm:$0xff]
    %v73 = vld [vmem:[#allocation8] sm:$0xff]
    %v74 = vld [vmem:[#allocation8 + $0x8] sm:$0xff]
    %76 = vset.pattern.permute.xlu0 0
    %77 = vperm.xlu0 %76, %v68
    %v78 = vpop.permute.xlu0 %77
    %v80 = vmul.f32 %v78, %v71
    %v81 = vmul.f32 %v78, %v72
    %82 = vset.pattern.permute.xlu0 4
    %83 = vperm.xlu0 %82, %v68
    %v84 = vpop.permute.xlu0 %83
    %v86 = vmul.f32 %v84, %v73
    %v87 = vmul.f32 %v84, %v74
    %v88 = vsub.f32 1.0, %v86
    %v89 = vsub.f32 1.0, %v87
    %v90 = vmul.f32 %v80, %v88
    %v91 = vmul.f32 %v81, %v89
    %92 = vset.pattern.permute.xlu0 2
    %93 = vperm.xlu0 %92, %v68
    %v94 = vpop.permute.xlu0 %93
    %v96 = vadd.f32 %v90, %v94
    %v97 = vadd.f32 %v91, %v94
    %98 = vset.pattern.permute.xlu0 1
    %99 = vperm.xlu0 %98, %v68
    %v100 = vpop.permute.xlu0 %99
    %v102 = vmul.f32 %v100, %v69
    %v103 = vmul.f32 %v100, %v70
    %v104 = vadd.f32 %v96, %v102
    %v105 = vadd.f32 %v97, %v103
    %106 = vset.pattern.permute.xlu0 3
    %107 = vperm.xlu0 %106, %v68
    %v108 = vpop.permute.xlu0 %107
    %v110 = vmul.f32 %v108, %v73
    %v111 = vmul.f32 %v108, %v74
    %v112 = vadd.f32 %v104, %v110
    %v113 = vadd.f32 %v105, %v111
    %114 = vst [vmem:[#allocation11] sm:$0xff] %v112
    %115 = vst [vmem:[#allocation11 + $0x8] sm:$0xff] %v113
    %116 = vset.pattern.permute.xlu0 5
    %117 = vperm.xlu0 %116, %v68
    %v118 = vpop.permute.xlu0 %117
    %v120 = vsub.f32 %v112, %v118
    %v121 = vsub.f32 %v113, %v118
    %vm122 = vcmp.gt.f32.partialorder %v120, 0.0
    %vm123 = vcmp.gt.f32.partialorder %v121, 0.0
    %v124 = vsel %vm122, 1, 0
    %v125 = vsel %vm123, 1, 0
    %v126 = vcvt.s32.f32 %v124
    %v127 = vcvt.s32.f32 %v125
    %v128 = vpack.c.bf16 %v126, %v126
    %v129 = vpack.c.bf16 %v127, %v127
    %v132 = vunpack.c.l.b16 %v128
    %v133 = vunpack.c.l.b16 %v129
    %v134 = vpack.c.b16 %v133, %v132
    %136 = vst [vmem:[#allocation10] sm:$0xff] %v134
    // Predicated region
    $region34: #{tpu_custom_call.1} parent=1 // pred_check
      _
    $region35: #{tpu_custom_call.1} parent=1 // pred_check_branch
      %138 = sbr.rel (0) target = $region37
    $region36: #{tpu_custom_call.1} parent=1 // pred_region
      %s140 = ssub.s32 128, 128
      %141 = vsyncadd [#allocation4], %s140
      %s143 = sshll.u32 [#allocation10], 4
      %s144 = int_to_ptr.vmem [resolvable:$true] %s143
      %146 = dma.vmem_to_hbm [thread:$0]  %s144, 128, %s4, [#allocation4]
    $region37: #{tpu_custom_call.1} parent=1 // pred_fallthru
      _
    // Predicated region
    $region38: #{tpu_custom_call.1} parent=1 // pred_check
      _
    $region39: #{tpu_custom_call.1} parent=1 // pred_check_branch
      %148 = sbr.rel (0) target = $region41
    $region40: #{tpu_custom_call.1} parent=1 // pred_region
      %s150 = ssub.s32 256, 256
      %151 = vsyncadd [#allocation12], %s150
      %s153 = sshll.u32 [#allocation11], 4
      %s154 = int_to_ptr.vmem [resolvable:$true] %s153
      %156 = dma.vmem_to_hbm [thread:$0]  %s154, 256, %s5, [#allocation12]
    $region41: #{tpu_custom_call.1} parent=1 // pred_fallthru
      _
    // Predicated region
    $region42: #{tpu_custom_call.1} parent=1 // pred_check
      _
    $region43: #{tpu_custom_call.1} parent=1 // pred_check_branch
      %158 = sbr.rel (0) target = $region45
    $region44: #{tpu_custom_call.1} parent=1 // pred_region
      %159 = dma.done [#allocation4], 128
    $region45: #{tpu_custom_call.1} parent=1 // pred_fallthru
      _
    // Predicated region
    $region46: #{tpu_custom_call.1} parent=1 // pred_check
      _
    $region47: #{tpu_custom_call.1} parent=1 // pred_check_branch
      %161 = sbr.rel (0) target = $region49
    $region48: #{tpu_custom_call.1} parent=1 // pred_region
      %162 = dma.done [#allocation12], 256
    $region49: #{tpu_custom_call.1} parent=1 // pred_fallthru
      _
    %163 = vsyncpa [#allocation3], 1
    %164 = vsyncpa [#allocation6], 1
    %165 = vsyncpa [#allocation9], 1
    %166 = vsyncpa [#allocation4], 1
    %167 = vsyncpa [#allocation12], 1

</llo_original>
